<compile_context>
chip_gen: v5e
topology: v5e:2x2
jax: 0.10.0
libtpu: 0.0.40
codegen_flags: <defaults>
</compile_context>

<pallas_src>
import functools

import jax
import jax.numpy as jnp
from jax.experimental import pallas as pl
from jax.experimental.pallas import tpu as pltpu


def _round_up(x, m):
    return ((x + m - 1) // m) * m


def _cdiv(a, b):
    return -(-a // b)


def mlp_kernel(x_ref, w1_ref, b1_ref, w2_ref, b2_ref, o_ref):
    # fc1: x @ W1 + b1, ReLU.  All f32 (MXU f32 path; exact parity with the
    # PyTorch reference, no per-step pack casts).  K = n_state is tiny and
    # unpadded -- Mosaic handles the short contraction internally.
    h = jnp.dot(x_ref[...], w1_ref[...], preferred_element_type=jnp.float32)
    h = jnp.maximum(h + b1_ref[...], 0.0)
    # out: h @ W2 + b2  (Hp = 128 lane-dense intermediate).
    y = jnp.dot(h, w2_ref[...], preferred_element_type=jnp.float32)
    o_ref[...] = (y + b2_ref[...]).astype(o_ref.dtype)


def prepare_params(w1, b1, w2, b2):
    """One-time conversion of PyTorch-layout params ([out, in]) into padded,
    pre-transposed [in, out] TPU layout.  Call once at init, NOT per forward.

    W1 keeps its true (tiny) input dim; only hidden / action dims are padded
    to 128 so the intermediate and output are lane-dense."""
    hidden, n_state = w1.shape
    n_action = w2.shape[0]
    Hp = _round_up(hidden, 128)
    Ap = _round_up(n_action, 128)
    w1_p = jnp.zeros((n_state, Hp), jnp.float32).at[:, :hidden].set(w1.T)
    b1_p = jnp.zeros((1, Hp), jnp.float32).at[0, :hidden].set(b1)
    w2_p = jnp.zeros((Hp, Ap), jnp.float32).at[:hidden, :n_action].set(w2.T)
    b2_p = jnp.zeros((1, Ap), jnp.float32).at[0, :n_action].set(b2)
    return w1_p, b1_p, w2_p, b2_p, n_state, n_action


def _choose_batch_tiling(B, cap=1024, split_threshold=64):
    """Balanced batch tiles: minimal padding, >=2 parallel steps for medium or
    large batches so both v7x TensorCores get work (harmless on 1-TC chips)."""
    n_steps = max(1, _cdiv(B, cap))
    if B >= split_threshold:
        n_steps = max(n_steps, 2)
    TB = _round_up(_cdiv(B, n_steps), 8)
    Bp = TB * n_steps
    return TB, Bp


@functools.partial(jax.jit, static_argnames=("n_state", "n_action"))
def net_forward(x, w1_p, b1_p, w2_p, b2_p, *, n_state, n_action):
    """Forward pass. x: [B, n_state] f32; padded params from prepare_params."""
    B = x.shape[0]
    _, Hp = w1_p.shape
    Ap = w2_p.shape[1]

    TB, Bp = _choose_batch_tiling(B)

    # Only the batch rows are padded (tiny: (Bp-B) x n_state), and only when
    # B is not already a tile multiple.  Padded rows are sliced off below.
    x = x.astype(jnp.float32)
    x_p = x if Bp == B else jnp.pad(x, ((0, Bp - B), (0, 0)))

    flops = 2 * Bp * (n_state * Hp + Hp * Ap)
    bytes_accessed = 4 * (Bp * n_state + n_state * Hp + Hp
                          + Hp * Ap + Ap + Bp * Ap)

    out_p = pl.pallas_call(
        mlp_kernel,
        out_shape=jax.ShapeDtypeStruct((Bp, Ap), jnp.float32),
        grid=(Bp // TB,),
        in_specs=[
            # x tile: last dim == full array dim (n_state), so no 128-pad.
            pl.BlockSpec((TB, n_state), lambda i: (i, 0)),
            pl.BlockSpec((n_state, Hp), lambda i: (0, 0)),  # W1 resident
            pl.BlockSpec((1, Hp), lambda i: (0, 0)),        # b1 resident
            pl.BlockSpec((Hp, Ap), lambda i: (0, 0)),       # W2 resident
            pl.BlockSpec((1, Ap), lambda i: (0, 0)),        # b2 resident
        ],
        out_specs=pl.BlockSpec((TB, Ap), lambda i: (i, 0)),  # lane-dense 128
        compiler_params=pltpu.CompilerParams(
            dimension_semantics=("parallel",)),
        cost_estimate=pl.CostEstimate(
            flops=flops, transcendentals=0, bytes_accessed=bytes_accessed),
    )(x_p, w1_p, b1_p, w2_p, b2_p)

    return out_p[:B, :n_action]


def init_params(key, n_state, n_action, hidden=50):
    """Matches the PyTorch module: weights ~ N(0, 0.1); biases use the default
    nn.Linear init U(-1/sqrt(fan_in), 1/sqrt(fan_in))."""
    k1, k2, k3, k4 = jax.random.split(key, 4)
    w1 = 0.1 * jax.random.normal(k1, (hidden, n_state), jnp.float32)
    bound1 = 1.0 / jnp.sqrt(n_state)
    b1 = jax.random.uniform(k2, (hidden,), jnp.float32, -bound1, bound1)
    w2 = 0.1 * jax.random.normal(k3, (n_action, hidden), jnp.float32)
    bound2 = 1.0 / jnp.sqrt(hidden)
    b2 = jax.random.uniform(k4, (n_action,), jnp.float32, -bound2, bound2)
    return w1, b1, w2, b2


if __name__ == "__main__":
    key = jax.random.PRNGKey(0)
    # Small shapes consistent with a DQN (e.g. CartPole: n_state=4, n_action=2).
    B, n_state, n_action = 2, 4, 2

    kx, kp, kb = jax.random.split(key, 3)
    x = jax.random.normal(kx, (B, n_state), jnp.float32)
    w1, b1, w2, b2 = init_params(kp, n_state, n_action)

    # One-time param prep (hoisted out of the forward pass).
    w1_p, b1_p, w2_p, b2_p, ns, na = prepare_params(w1, b1, w2, b2)

    out = net_forward(x, w1_p, b1_p, w2_p, b2_p, n_state=ns, n_action=na)
    out = jax.block_until_ready(out)

    # Pure-JAX f32 reference.  Kernel is now f32 end-to-end, so tolerance is
    # tight (MXU f32 contraction vs XLA f32 reference).
    ref = jnp.maximum(x @ w1.T + b1, 0.0) @ w2.T + b2
    assert out.shape == (B, n_action)
    assert jnp.allclose(out, ref, atol=5e-3, rtol=5e-3)

    # Larger batch exercises the balanced batch grid (B=600 -> 2 x 304 tiles).
    B2 = 600
    x2 = jax.random.normal(kb, (B2, n_state), jnp.float32)
    out2 = jax.block_until_ready(
        net_forward(x2, w1_p, b1_p, w2_p, b2_p, n_state=ns, n_action=na))
    ref2 = jnp.maximum(x2 @ w1.T + b1, 0.0) @ w2.T + b2
    assert out2.shape == (B2, n_action)
    assert jnp.allclose(out2, ref2, atol=5e-3, rtol=5e-3)

    print("KERNEL_OK")
</pallas_src>

<mosaic_0001>
module attributes {stable_mosaic.version = 11 : i64} {
  func.func @mlp_kernel(%arg0: i32, %arg1: memref<8x4xf32, #tpu.memory_space<vmem>>, %arg2: memref<4x128xf32, #tpu.memory_space<vmem>>, %arg3: memref<1x128xf32, #tpu.memory_space<vmem>>, %arg4: memref<128x128xf32, #tpu.memory_space<vmem>>, %arg5: memref<1x128xf32, #tpu.memory_space<vmem>>, %arg6: memref<8x128xf32, #tpu.memory_space<vmem>>) attributes {dimension_semantics = [#tpu.dimension_semantics<parallel>], iteration_bounds = array<i64: 1>, scalar_prefetch = 0 : i64, scratch_operands = 0 : i64, tpu.core_type = #tpu.core_type<tc>, window_params = [{transform_indices = @transform_0, window_bounds = array<i64: 8, 4>}, {pipeline_mode = #tpu.pipeline_mode<synchronous>, transform_indices = @transform_1, window_bounds = array<i64: 4, 128>}, {pipeline_mode = #tpu.pipeline_mode<synchronous>, transform_indices = @transform_2, window_bounds = array<i64: 1, 128>}, {pipeline_mode = #tpu.pipeline_mode<synchronous>, transform_indices = @transform_3, window_bounds = array<i64: 128, 128>}, {pipeline_mode = #tpu.pipeline_mode<synchronous>, transform_indices = @transform_4, window_bounds = array<i64: 1, 128>}, {transform_indices = @transform_5, window_bounds = array<i64: 8, 128>}]} {
    %c0 = arith.constant 0 : index
    %c0_0 = arith.constant 0 : index
    %0 = vector.load %arg1[%c0, %c0_0] : memref<8x4xf32, #tpu.memory_space<vmem>>, vector<8x4xf32>
    %c0_1 = arith.constant 0 : index
    %c0_2 = arith.constant 0 : index
    %1 = vector.load %arg2[%c0_1, %c0_2] : memref<4x128xf32, #tpu.memory_space<vmem>>, vector<4x128xf32>
    %cst = arith.constant dense<0.000000e+00> : vector<8x128xf32>
    %2 = tpu.matmul %0, %1, %cst {dimension_numbers = #tpu.dot_dimension_numbers<[1], [0], [0], [1], [0, 0, 1, 1], [], []>} : vector<8x4xf32>, vector<4x128xf32>, vector<8x128xf32> -> vector<8x128xf32>
    %c0_3 = arith.constant 0 : index
    %c0_4 = arith.constant 0 : index
    %3 = vector.load %arg3[%c0_3, %c0_4] : memref<1x128xf32, #tpu.memory_space<vmem>>, vector<1x128xf32>
    %4 = vector.broadcast %3 : vector<1x128xf32> to vector<8x128xf32>
    %5 = arith.addf %2, %4 : vector<8x128xf32>
    %cst_5 = arith.constant 0.000000e+00 : f32
    %6 = vector.broadcast %cst_5 : f32 to vector<8x128xf32>
    %7 = arith.maximumf %5, %6 : vector<8x128xf32>
    %c0_6 = arith.constant 0 : index
    %c0_7 = arith.constant 0 : index
    %8 = vector.load %arg4[%c0_6, %c0_7] : memref<128x128xf32, #tpu.memory_space<vmem>>, vector<128x128xf32>
    %cst_8 = arith.constant dense<0.000000e+00> : vector<8x128xf32>
    %9 = tpu.matmul %7, %8, %cst_8 {dimension_numbers = #tpu.dot_dimension_numbers<[1], [0], [0], [1], [0, 0, 1, 1], [], []>} : vector<8x128xf32>, vector<128x128xf32>, vector<8x128xf32> -> vector<8x128xf32>
    %c0_9 = arith.constant 0 : index
    %c0_10 = arith.constant 0 : index
    %10 = vector.load %arg5[%c0_9, %c0_10] : memref<1x128xf32, #tpu.memory_space<vmem>>, vector<1x128xf32>
    %11 = vector.broadcast %10 : vector<1x128xf32> to vector<8x128xf32>
    %12 = arith.addf %9, %11 : vector<8x128xf32>
    %c0_11 = arith.constant 0 : index
    %c0_12 = arith.constant 0 : index
    %13 = vector.load %arg6[%c0_11, %c0_12] : memref<8x128xf32, #tpu.memory_space<vmem>>, vector<8x128xf32>
    tpu.vector_store %arg6[%c0_11, %c0_12], %12 {strides = array<i32>} : memref<8x128xf32, #tpu.memory_space<vmem>>, vector<8x128xf32>,
    return
  }
  func.func @transform_0(%arg0: i32) -> (i32, i32) {
    %c0_i32 = arith.constant 0 : i32
    %c0_i32_0 = arith.constant 0 : i32
    return %arg0, %c0_i32 : i32, i32
  }
  func.func @transform_1(%arg0: i32) -> (i32, i32) {
    %c0_i32 = arith.constant 0 : i32
    %c0_i32_0 = arith.constant 0 : i32
    %c0_i32_1 = arith.constant 0 : i32
    return %c0_i32, %c0_i32_0 : i32, i32
  }
  func.func @transform_2(%arg0: i32) -> (i32, i32) {
    %c0_i32 = arith.constant 0 : i32
    %c0_i32_0 = arith.constant 0 : i32
    %c0_i32_1 = arith.constant 0 : i32
    return %c0_i32, %c0_i32_0 : i32, i32
  }
  func.func @transform_3(%arg0: i32) -> (i32, i32) {
    %c0_i32 = arith.constant 0 : i32
    %c0_i32_0 = arith.constant 0 : i32
    %c0_i32_1 = arith.constant 0 : i32
    return %c0_i32, %c0_i32_0 : i32, i32
  }
  func.func @transform_4(%arg0: i32) -> (i32, i32) {
    %c0_i32 = arith.constant 0 : i32
    %c0_i32_0 = arith.constant 0 : i32
    %c0_i32_1 = arith.constant 0 : i32
    return %c0_i32, %c0_i32_0 : i32, i32
  }
  func.func @transform_5(%arg0: i32) -> (i32, i32) {
    %c0_i32 = arith.constant 0 : i32
    %c0_i32_0 = arith.constant 0 : i32
    return %arg0, %c0_i32 : i32, i32
  }
}

</mosaic_0001>

<llo_original>
// kernel: net_forward.1
$region0: #{net_forward.1}
  #allocation0 [shape = 'u32[]', space=smem, size = 0x4, offset = 0x4, fixed_abs, tag = 'smem constant byte address 0x4 - core index']
  #allocation1 [shape = 'u32[72,128]{1,0:T(1,128)}', space=vmem, size = 0x9000, scoped, tag = 'internal scratch']
  %s0 = inlined_call_operand.vmem [shape: f32[8,4], index: 0, kind: input, shape index: {}]
  %s1 = inlined_call_operand.vmem [shape: f32[4,128], index: 1, kind: input, shape index: {}]
  %s2 = inlined_call_operand.vmem [shape: f32[1,128], index: 2, kind: input, shape index: {}]
  %s3 = inlined_call_operand.hbm [shape: f32[128,128], index: 3, kind: input, shape index: {}]
  %s4 = inlined_call_operand.vmem [shape: f32[1,128], index: 4, kind: input, shape index: {}]
  %s5 = inlined_call_operand.vmem [shape: f32[8,128], index: 5, kind: output, shape index: {}]
  %s6 = sld [smem:[#allocation0]]
  $region34: #{net_forward.1} parent=0
    _
  %s8 = ssub.s32 1, %s6
  %s9 = scalar_select 0, %s8, %s6
  $region1: #{net_forward.1} parent=0
    #allocation2 [shape = 'u8[65536]{0}', space=vmem, size = 0x10000, scoped, tag = 'input window, operand 3, single buffered']
    #allocation3 [shape = 's32[1]{0}', space=sflag, size = 0x4, scoped, tag = 'scoped memory for net_forward.1']
    %10 = vsyncpa [#allocation3], 0
    // Predicated region
    $region2: #{net_forward.1} parent=1 // pred_check
      _
    $region3: #{net_forward.1} parent=1 // pred_check_branch
      %12 = sbr.rel (0) target = $region5
    $region4: #{net_forward.1} parent=1 // pred_region
      _
    $region5: #{net_forward.1} parent=1 // pred_fallthru
      _
    // Predicated region
    $region6: #{net_forward.1} parent=1 // pred_check
      _
    $region7: #{net_forward.1} parent=1 // pred_check_branch
      %14 = sbr.rel (0) target = $region9
    $region8: #{net_forward.1} parent=1 // pred_region
      _
    $region9: #{net_forward.1} parent=1 // pred_fallthru
      _
    // Predicated region
    $region10: #{net_forward.1} parent=1 // pred_check
      _
    $region11: #{net_forward.1} parent=1 // pred_check_branch
      %16 = sbr.rel (0) target = $region13
    $region12: #{net_forward.1} parent=1 // pred_region
      _
    $region13: #{net_forward.1} parent=1 // pred_fallthru
      _
    // Predicated region
    $region14: #{net_forward.1} parent=1 // pred_check
      _
    $region15: #{net_forward.1} parent=1 // pred_check_branch
      %18 = sbr.rel (0) target = $region17
    $region16: #{net_forward.1} parent=1 // pred_region
      %20 = vsyncadd [#allocation3], 0
      %s21 = sshll.u32 %s3, 4
      %s22 = int_to_ptr.hbm [resolvable:$true] %s21
      %s23 = sshll.u32 [#allocation2], 4
      %s24 = int_to_ptr.vmem [resolvable:$true] %s23
      %29 = dma.hbm_to_vmem [thread:$0]  %s22, 2048, %s24, [#allocation3], 128, 128, 8
    $region17: #{net_forward.1} parent=1 // pred_fallthru
      _
    // Predicated region
    $region18: #{net_forward.1} parent=1 // pred_check
      _
    $region19: #{net_forward.1} parent=1 // pred_check_branch
      %31 = sbr.rel (0) target = $region21
    $region20: #{net_forward.1} parent=1 // pred_region
      _
    $region21: #{net_forward.1} parent=1 // pred_fallthru
      _
    // Predicated region
    $region22: #{net_forward.1} parent=1 // pred_check
      _
    $region23: #{net_forward.1} parent=1 // pred_check_branch
      %33 = sbr.rel (0) target = $region25
    $region24: #{net_forward.1} parent=1 // pred_region
      %35 = dma.done [#allocation3], 2048
    $region25: #{net_forward.1} parent=1 // pred_fallthru
      _
    %v36 = vld [vmem:[%s0] sm:$0xff]
    %v37 = vld [vmem:[%s1] sm:$0xf]
    %v38 = vld [vmem:[%s2] sm:$0x1]
    %v40 = vperm.slane %v38, 0
    %vm42 = vcmask 31744
    %v44 = vsel %vm42, %v36, 0
    %vm46 = vcmask 1043456
    %v48 = vsel %vm46, %v37, 0
    %50 = vmatpush.msra.mxu0 0.0
    %51 = vmatpush.msra.mxu0 0.0
    %52 = vmatpush.msra.mxu0 0.0
    %53 = vmatpush.msra.mxu0 0.0
    %54 = vmatpush.msra.mxu0 0.0
    %55 = vmatpush.msra.mxu0 0.0
    %56 = vmatpush.msra.mxu0 0.0
    %57 = vmatpush.msra.mxu0 0.0
    %58 = vmatpush.msra.mxu0 0.0
    %59 = vmatpush.msra.mxu0 0.0
    %60 = vmatpush.msra.mxu0 0.0
    %61 = vmatpush.msra.mxu0 0.0
    %62 = vmatpush.msra.mxu0 0.0
    %63 = vmatpush.msra.mxu0 0.0
    %64 = vmatpush.msra.mxu0 0.0
    %65 = vmatpush.msra.mxu0 %v48
    %66 = vmatmul.f32.gmra.mxu0 %v44
    %v67 = vpop.f32.mrf.mxu0
    %v68 = vadd.f32 %v40, %v67
    %69 = vdwg.mxu0
    %v70 = vmax.f32 %v68, 0.0
    %v71 = vld [vmem:[#allocation2] sm:$0xff]
    %v72 = vld [vmem:[#allocation2 + $0x8] sm:$0xff]
    %v73 = vld [vmem:[#allocation2 + $0x10] sm:$0xff]
    %v74 = vld [vmem:[#allocation2 + $0x18] sm:$0xff]
    %v75 = vld [vmem:[#allocation2 + $0x20] sm:$0xff]
    %v76 = vld [vmem:[#allocation2 + $0x28] sm:$0xff]
    %v77 = vld [vmem:[#allocation2 + $0x30] sm:$0xff]
    %v78 = vld [vmem:[#allocation2 + $0x38] sm:$0xff]
    %v79 = vld [vmem:[#allocation2 + $0x40] sm:$0xff]
    %v80 = vld [vmem:[#allocation2 + $0x48] sm:$0xff]
    %v81 = vld [vmem:[#allocation2 + $0x50] sm:$0xff]
    %v82 = vld [vmem:[#allocation2 + $0x58] sm:$0xff]
    %v83 = vld [vmem:[#allocation2 + $0x60] sm:$0xff]
    %v84 = vld [vmem:[#allocation2 + $0x68] sm:$0xff]
    %v85 = vld [vmem:[#allocation2 + $0x70] sm:$0xff]
    %v86 = vld [vmem:[#allocation2 + $0x78] sm:$0xff]
    %v87 = vld [vmem:[%s4] sm:$0x1]
    %v89 = vperm.slane %v87, 0
    %91 = vmatpush.msra.mxu0 %v86
    %92 = vmatpush.msra.mxu0 %v85
    %93 = vmatpush.msra.mxu0 %v84
    %94 = vmatpush.msra.mxu0 %v83
    %95 = vmatpush.msra.mxu0 %v82
    %96 = vmatpush.msra.mxu0 %v81
    %97 = vmatpush.msra.mxu0 %v80
    %98 = vmatpush.msra.mxu0 %v79
    %99 = vmatpush.msra.mxu0 %v78
    %100 = vmatpush.msra.mxu0 %v77
    %101 = vmatpush.msra.mxu0 %v76
    %102 = vmatpush.msra.mxu0 %v75
    %103 = vmatpush.msra.mxu0 %v74
    %104 = vmatpush.msra.mxu0 %v73
    %105 = vmatpush.msra.mxu0 %v72
    %106 = vmatpush.msra.mxu0 %v71
    %107 = vmatmul.f32.gmra.mxu0 %v70
    %v108 = vpop.f32.mrf.mxu0
    %v109 = vadd.f32 %v89, %v108
    %110 = vdwg.mxu0
    %111 = vst [vmem:[%s5] sm:$0xff] %v109
    // Predicated region
    $region26: #{net_forward.1} parent=1 // pred_check
      _
    $region27: #{net_forward.1} parent=1 // pred_check_branch
      %113 = sbr.rel (0) target = $region29
    $region28: #{net_forward.1} parent=1 // pred_region
      _
    $region29: #{net_forward.1} parent=1 // pred_fallthru
      _
    // Predicated region
    $region30: #{net_forward.1} parent=1 // pred_check
      _
    $region31: #{net_forward.1} parent=1 // pred_check_branch
      %115 = sbr.rel (0) target = $region33
    $region32: #{net_forward.1} parent=1 // pred_region
      _
    $region33: #{net_forward.1} parent=1 // pred_fallthru
      _
    %116 = vsyncpa [#allocation3], 1

</llo_original>
